<compile_context>
chip_gen: v7x
topology: tpu7x:2x2x1
jax: 0.10.0
libtpu: 0.0.40
codegen_flags: <defaults>
</compile_context>

<pallas_src>
import functools

import jax
import jax.numpy as jnp
from jax import lax
from jax.experimental import pallas as pl
from jax.experimental.pallas import tpu as pltpu


# ---------------------------------------------------------------------------
# Kernels
# ---------------------------------------------------------------------------
def _glm_kernel(x_ref, w_ref, b_ref, o_ref, *, use_exp: bool):
    """Single-pass GLM tile: z = x @ w + b (-> exp for the gamma log link).

    x_ref: (TN, P) VMEM, input dtype   (batch tile, streamed)
    w_ref: (1, P)  VMEM, input dtype   (resident)
    b_ref: (1,)    SMEM, f32           (scalar)
    o_ref: (1, TN) VMEM, f32           (lane-dense output row)
    """
    # NT matmul: contract the trailing (lane) dim of both operands. This is the
    # MXU-native transposed-RHS form (same pattern as q @ k^T in flash
    # attention), so the big x tile is neither upcast on the VPU nor transposed
    # through the XLU, and the result is produced lane-dense as (1, TN).
    z = lax.dot_general(w_ref[...], x_ref[...], (((1,), (1,)), ((), ())),
                        preferred_element_type=jnp.float32)
    z = z + b_ref[0]
    if use_exp:                                   # gamma GLM log link (EUP slot)
        z = jnp.exp(z)
    o_ref[...] = z


def _glm_kernel_ktiled(x_ref, w_ref, b_ref, o_ref, acc_ref, *,
                       use_exp: bool, p_total: int, tk: int):
    """Feature-tiled GLM (very large P): accumulate partial dot products."""
    k = pl.program_id(1)

    @pl.when(k == 0)
    def _():
        acc_ref[...] = jnp.zeros_like(acc_ref)

    x = x_ref[...]
    w = w_ref[...]
    if p_total % tk != 0:
        # The last K block reads past the end of the feature dim; zero *both*
        # operands there so OOB garbage (possibly NaN/Inf) never reaches acc.
        rem = p_total - k * tk
        x = jnp.where(lax.broadcasted_iota(jnp.int32, x.shape, 1) < rem,
                      x, jnp.zeros_like(x))
        w = jnp.where(lax.broadcasted_iota(jnp.int32, w.shape, 1) < rem,
                      w, jnp.zeros_like(w))
    acc_ref[...] += lax.dot_general(w, x, (((1,), (1,)), ((), ())),
                                    preferred_element_type=jnp.float32)

    @pl.when(k == pl.num_programs(1) - 1)
    def _():
        z = acc_ref[...] + b_ref[0]
        if use_exp:
            z = jnp.exp(z)
        o_ref[...] = z


# ---------------------------------------------------------------------------
# Wrapper
# ---------------------------------------------------------------------------
def _vmem_capacity_bytes() -> int:
    try:
        cap = int(getattr(pltpu.get_tpu_info(), "vmem_capacity_bytes", 0))
        if cap > 0:
            return cap
    except Exception:
        pass
    return 64 << 20          # conservative fallback = v7x per-TensorCore VMEM


def _rd128(v: int) -> int:
    return (v // 128) * 128


def glm_forward(x: jax.Array, weight: jax.Array, bias: jax.Array,
                distribution: str, *, batch_tile=None, feature_tile=None):
    """Pallas equivalent of GLM.forward: (N, P) -> (N,) float32 predictions."""
    if distribution not in ("gamma", "gaussian"):
        raise ValueError(f"Unsupported model type: {distribution}")
    use_exp = distribution == "gamma"
    N, P = x.shape
    itemsize = jnp.dtype(x.dtype).itemsize

    # Cast the tiny parameters host-side; the MXU consumes bf16/f32 natively
    # with f32 accumulation, so x itself is streamed uncopied in its own dtype.
    wp = jnp.asarray(weight).reshape(1, P).astype(x.dtype)
    bp = jnp.asarray(bias).reshape(1).astype(jnp.float32)

    # Per-generation VMEM budget, counting *lane-padded* VMEM block sizes
    # (a (TN, P) block occupies TN x ceil(P/128)*128 x itemsize bytes in VMEM).
    vmem_cap = _vmem_capacity_bytes()                  # 128 MiB v5e/v6e, 64 MiB/TC v7x
    clamp_hi = max(32 << 20, vmem_cap - (16 << 20))    # headroom for Mosaic scratch
    buffer_budget = clamp_hi - (8 << 20)               # for x/out pipeline buffers
    lanes = -(-P // 128) * 128
    x_row_bytes = lanes * itemsize                     # padded VMEM bytes / row / buffer
    out_row_bytes = 8 * 4                              # (1, TN) f32 block: 8 sublanes pad

    max_tn = _rd128(buffer_budget // (2 * x_row_bytes + 2 * out_row_bytes))
    use_ktiling = feature_tile is not None or max_tn < 128

    if not use_ktiling:
        if batch_tile is not None:
            tn = int(batch_tile)
        else:
            # ~4 MiB of *real* x bytes per grid step (multiples of 128 rows),
            # so per-step pipeline overhead is negligible for a mem-bound matvec.
            target = max(128, _rd128((4 << 20) // max(P * itemsize, 1)))
            tn = int(min(max_tn, 65536, target))
            if N <= tn:
                tn = N                                 # one full-extent block
            elif N >= 4 * 128:
                # Prefer >= 4 grid steps so v7x can shard the "parallel" axis
                # across both TensorCores (each with its own HBM path).
                tn = min(tn, max(128, _rd128(N // 4)))
        grid_n = pl.cdiv(N, tn)

        # Triple-buffer the x stream only when blocks are small and the grid is
        # long (hides DMA issue latency / per-step bubble, negligible VMEM cost).
        extra_buffering = (tn * P * itemsize <= (256 << 10)) and grid_n >= 4
        n_x_bufs = 3 if extra_buffering else 2
        vmem_limit = (n_x_bufs * tn * x_row_bytes        # x pipeline buffers
                      + 2 * tn * out_row_bytes           # lane-dense output buffers
                      + 2 * 8 * lanes * itemsize         # resident weight
                      + (4 << 20))                       # headroom
        vmem_limit = int(min(max(vmem_limit, 16 << 20), clamp_hi))

        def run(x_spec):
            return pl.pallas_call(
                functools.partial(_glm_kernel, use_exp=use_exp),
                out_shape=jax.ShapeDtypeStruct((1, N), jnp.float32),
                grid=(grid_n,),
                in_specs=[
                    x_spec,                                             # x batch tile
                    pl.BlockSpec((1, P), lambda i: (0, 0)),             # weight
                    pl.BlockSpec(memory_space=pltpu.MemorySpace.SMEM),  # bias scalar
                ],
                out_specs=pl.BlockSpec((1, tn), lambda i: (0, i)),      # lane-dense
                compiler_params=pltpu.CompilerParams(
                    dimension_semantics=("parallel",),
                    vmem_limit_bytes=vmem_limit),
            )(x, wp, bp)

        if extra_buffering:
            try:
                return run(pl.BlockSpec((tn, P), lambda i: (i, 0),
                                        pipeline_mode=pl.Buffered(3)))[0]
            except Exception:
                pass                       # fall back to default double buffering
        return run(pl.BlockSpec((tn, P), lambda i: (i, 0)))[0]

    # ---- K-tiled fallback: feature dim too large for a single resident block
    # (v7x hits this at roughly half the P of v5e/v6e), or forced for testing. ----
    tn = int(batch_tile) if batch_tile is not None else min(N, 1024)
    if feature_tile is not None:
        tk = int(feature_tile)
    else:
        tk = min(lanes, max(128, _rd128(buffer_budget // (4 * tn * itemsize))))
    grid = (pl.cdiv(N, tn), pl.cdiv(P, tk))              # reduction axis last
    vmem_limit = (2 * tn * tk * itemsize                 # x buffers
                  + 2 * 8 * tk * itemsize                # weight buffers
                  + 3 * tn * out_row_bytes               # output buffers + accumulator
                  + (4 << 20))
    vmem_limit = int(min(max(vmem_limit, 16 << 20), clamp_hi))
    out = pl.pallas_call(
        functools.partial(_glm_kernel_ktiled, use_exp=use_exp, p_total=P, tk=tk),
        out_shape=jax.ShapeDtypeStruct((1, N), jnp.float32),
        grid=grid,
        in_specs=[
            pl.BlockSpec((tn, tk), lambda i, k: (i, k)),
            pl.BlockSpec((1, tk), lambda i, k: (0, k)),
            pl.BlockSpec(memory_space=pltpu.MemorySpace.SMEM),
        ],
        out_specs=pl.BlockSpec((1, tn), lambda i, k: (0, i)),
        scratch_shapes=[pltpu.VMEM((1, tn), jnp.float32)],
        compiler_params=pltpu.CompilerParams(
            dimension_semantics=("parallel", "arbitrary"),
            vmem_limit_bytes=vmem_limit),
    )(x, wp, bp)
    return out[0]


def _glm_forward_ref(x, weight, bias, distribution):
    z = (x.astype(jnp.float32) @ jnp.asarray(weight).reshape(-1).astype(jnp.float32)
         + jnp.asarray(bias).astype(jnp.float32)[0])
    return jnp.exp(z) if distribution == "gamma" else z


if __name__ == "__main__":
    key = jax.random.PRNGKey(0)
    # Small shapes consistent with the module (nn.Linear(p, 1) on an (N, p) batch):
    #  - (8, 4): tiny single-block case
    #  - (600, 16) with batch_tile=128: multi-step grid, ragged batch tail,
    #    triple-buffered x stream
    #  - (384, 320) with feature_tile=128: K-tiled accumulator path with a
    #    ragged (masked) feature tail
    cases = [
        (8, 4, {}),
        (600, 16, {"batch_tile": 128}),
        (384, 320, {"feature_tile": 128}),
    ]
    for n, p, kwargs in cases:
        kx, kwt, kb = jax.random.split(jax.random.fold_in(key, n * 1000 + p), 3)
        x = jax.random.normal(kx, (n, p), dtype=jnp.float32)
        weight = jax.random.normal(kwt, (1, p), dtype=jnp.float32) * 0.05
        bias = jax.random.normal(kb, (1,), dtype=jnp.float32) * 0.1
        for dist in ("gamma", "gaussian"):
            out = jax.block_until_ready(glm_forward(x, weight, bias, dist, **kwargs))
            ref = _glm_forward_ref(x, weight, bias, dist)
            assert out.shape == (n,), (out.shape, n)
            # MXU f32 matmuls may use bf16-pass decomposition -> loose tolerance.
            assert jnp.allclose(out, ref, rtol=3e-2, atol=3e-2), (
                n, p, dist, float(jnp.max(jnp.abs(out - ref))))

    # TODO(synk): distributions()/icdf()/quantiles()/update_dispersion()/
    # from_statsmodels() are host-side statsmodels / torch.distributions /
    # bisection utilities outside the forward hot path; not implemented as kernels.
    print("KERNEL_OK")
</pallas_src>

<mosaic_0001>
module attributes {stable_mosaic.version = 11 : i64} {
  func.func @_glm_kernel(%arg0: i32, %arg1: memref<8x4xf32, #tpu.memory_space<vmem>>, %arg2: memref<1x4xf32, #tpu.memory_space<vmem>>, %arg3: memref<1xf32, #tpu.memory_space<smem>>, %arg4: memref<1x8xf32, #tpu.memory_space<vmem>>) attributes {dimension_semantics = [#tpu.dimension_semantics<parallel>], iteration_bounds = array<i64: 1>, scalar_prefetch = 0 : i64, scratch_operands = 0 : i64, tpu.core_type = #tpu.core_type<tc>, window_params = [{transform_indices = @transform_0, window_bounds = array<i64: 8, 4>}, {pipeline_mode = #tpu.pipeline_mode<synchronous>, transform_indices = @transform_1, window_bounds = array<i64: 1, 4>}, {transform_indices = @transform_2, window_bounds = array<i64: 1>}, {transform_indices = @transform_3, window_bounds = array<i64: 1, 8>}]} {
    %c0 = arith.constant 0 : index
    %c0_0 = arith.constant 0 : index
    %0 = vector.load %arg2[%c0, %c0_0] : memref<1x4xf32, #tpu.memory_space<vmem>>, vector<1x4xf32>
    %c0_1 = arith.constant 0 : index
    %c0_2 = arith.constant 0 : index
    %1 = vector.load %arg1[%c0_1, %c0_2] : memref<8x4xf32, #tpu.memory_space<vmem>>, vector<8x4xf32>
    %cst = arith.constant dense<0.000000e+00> : vector<1x8xf32>
    %2 = tpu.matmul %0, %1, %cst {dimension_numbers = #tpu.dot_dimension_numbers<[1], [1], [0], [0], [0, 0, 1, 0], [], []>} : vector<1x4xf32>, vector<8x4xf32>, vector<1x8xf32> -> vector<1x8xf32>
    %c0_3 = arith.constant 0 : index
    %3 = memref.load %arg3[%c0_3] : memref<1xf32, #tpu.memory_space<smem>>
    %4 = vector.broadcast %3 : f32 to vector<1x8xf32>
    %5 = arith.addf %2, %4 : vector<1x8xf32>
    %6 = math.exp %5 : vector<1x8xf32>
    %c0_4 = arith.constant 0 : index
    %c0_5 = arith.constant 0 : index
    %7 = vector.load %arg4[%c0_4, %c0_5] : memref<1x8xf32, #tpu.memory_space<vmem>>, vector<1x8xf32>
    tpu.vector_store %arg4[%c0_4, %c0_5], %6 {strides = array<i32>} : memref<1x8xf32, #tpu.memory_space<vmem>>, vector<1x8xf32>,
    return
  }
  func.func @transform_0(%arg0: i32) -> (i32, i32) {
    %c0_i32 = arith.constant 0 : i32
    %c0_i32_0 = arith.constant 0 : i32
    return %arg0, %c0_i32 : i32, i32
  }
  func.func @transform_1(%arg0: i32) -> (i32, i32) {
    %c0_i32 = arith.constant 0 : i32
    %c0_i32_0 = arith.constant 0 : i32
    %c0_i32_1 = arith.constant 0 : i32
    return %c0_i32, %c0_i32_0 : i32, i32
  }
  func.func @transform_2(%arg0: i32) -> i32 {
    %c0_i32 = arith.constant 0 : i32
    %c0_i32_0 = arith.constant 0 : i32
    return %c0_i32 : i32
  }
  func.func @transform_3(%arg0: i32) -> (i32, i32) {
    %c0_i32 = arith.constant 0 : i32
    %c0_i32_0 = arith.constant 0 : i32
    return %c0_i32, %arg0 : i32, i32
  }
}

</mosaic_0001>

<llo_original>
// kernel: tpu_custom_call.1
$region0: #{tpu_custom_call.1}
  #allocation0 [shape = 'u32[]', space=smem, size = 0x4, offset = 0x4, fixed_abs, tag = 'smem constant byte address 0x4 - core index']
  #allocation1 [shape = 'u32[144,128]{1,0:T(1,128)}', space=vmem, size = 0x12000, scoped, tag = 'internal scratch']
  #allocation2 [shape = 'f32[1]{0:T(128)S(6)}', space=smem, size = 0x200, scoped, tag = 'scoped memory for tpu_custom_call.1']
  %s0 = inlined_call_operand.vmem [shape: f32[8,4], index: 0, kind: input, shape index: {}]
  %s1 = inlined_call_operand.vmem [shape: f32[1,4], index: 1, kind: input, shape index: {}]
  %s2 = inlined_call_operand.<no memory space> [shape: f32[1], index: 2, kind: input, shape index: {}]
  %s3 = inlined_call_operand.hbm [shape: f32[1,8], index: 3, kind: output, shape index: {}]
  %s4 = sld [smem:[#allocation0]]
  $region22: #{tpu_custom_call.1} parent=0
    _
  %s6 = ssub.s32 1, %s4
  %s7 = scalar_select 0, %s6, %s4
  %8 = sst [smem:[#allocation2]] %s2
  $region1: #{tpu_custom_call.1} parent=0
    #allocation3 [shape = 'u8[512]{0}', space=vmem, size = 0x400, scoped, tag = 'output window, operand 0, single buffered']
    #allocation4 [shape = 's32[1]{0}', space=sflag, size = 0x4, scoped, tag = 'scoped memory for tpu_custom_call.1']
    %9 = vsyncpa [#allocation4], 0
    // Predicated region
    $region2: #{tpu_custom_call.1} parent=1 // pred_check
      _
    $region3: #{tpu_custom_call.1} parent=1 // pred_check_branch
      %11 = sbr.rel (0) target = $region5
    $region4: #{tpu_custom_call.1} parent=1 // pred_region
      _
    $region5: #{tpu_custom_call.1} parent=1 // pred_fallthru
      _
    // Predicated region
    $region6: #{tpu_custom_call.1} parent=1 // pred_check
      _
    $region7: #{tpu_custom_call.1} parent=1 // pred_check_branch
      %13 = sbr.rel (0) target = $region9
    $region8: #{tpu_custom_call.1} parent=1 // pred_region
      _
    $region9: #{tpu_custom_call.1} parent=1 // pred_fallthru
      _
    // Predicated region
    $region10: #{tpu_custom_call.1} parent=1 // pred_check
      _
    $region11: #{tpu_custom_call.1} parent=1 // pred_check_branch
      %15 = sbr.rel (0) target = $region13
    $region12: #{tpu_custom_call.1} parent=1 // pred_region
      _
    $region13: #{tpu_custom_call.1} parent=1 // pred_fallthru
      _
    %v16 = vld [vmem:[%s1] sm:$0x1]
    %v17 = vld [vmem:[%s0] sm:$0xff]
    %s18 = sld [smem:[#allocation2]]
    %v19 = vstv %s18
    %vm20 = vcmask 31744
    %v22 = vsel %vm20, %v16, 0
    %v25 = vsel %vm20, %v17, 0
    %27 = vmatprep.subr.mxu0 0.0
    %28 = vmatpush1.xpose.msra.mxu0 %v25
    %29 = vmatprep.subr.mxu0 0.0
    %30 = vmatpush1.xpose.msra.mxu0 0.0
    %31 = vmatprep.subr.mxu0 0.0
    %32 = vmatpush1.xpose.msra.mxu0 0.0
    %33 = vmatprep.subr.mxu0 0.0
    %34 = vmatpush1.xpose.msra.mxu0 0.0
    %35 = vmatprep.subr.mxu0 0.0
    %36 = vmatpush1.xpose.msra.mxu0 0.0
    %37 = vmatprep.subr.mxu0 0.0
    %38 = vmatpush1.xpose.msra.mxu0 0.0
    %39 = vmatprep.subr.mxu0 0.0
    %40 = vmatpush1.xpose.msra.mxu0 0.0
    %41 = vmatprep.subr.mxu0 0.0
    %42 = vmatpush1.xpose.msra.mxu0 0.0
    %43 = vmatprep.subr.mxu0 0.0
    %44 = vmatpush1.xpose.msra.mxu0 0.0
    %45 = vmatprep.subr.mxu0 0.0
    %46 = vmatpush1.xpose.msra.mxu0 0.0
    %47 = vmatprep.subr.mxu0 0.0
    %48 = vmatpush1.xpose.msra.mxu0 0.0
    %49 = vmatprep.subr.mxu0 0.0
    %50 = vmatpush1.xpose.msra.mxu0 0.0
    %51 = vmatprep.subr.mxu0 0.0
    %52 = vmatpush1.xpose.msra.mxu0 0.0
    %53 = vmatprep.subr.mxu0 0.0
    %54 = vmatpush1.xpose.msra.mxu0 0.0
    %55 = vmatprep.subr.mxu0 0.0
    %56 = vmatpush1.xpose.msra.mxu0 0.0
    %57 = vmatprep.subr.mxu0 0.0
    %58 = vmatpush1.xpose.msra.mxu0 0.0
    %59 = vmatprep.subr.mxu0 0.0
    %60 = vmatpush1.xpose.msra.mxu0 0.0
    %61 = vmatprep.subr.mxu0 0.0
    %62 = vmatpush1.xpose.msra.mxu0 0.0
    %63 = vmatprep.subr.mxu0 0.0
    %64 = vmatpush1.xpose.msra.mxu0 0.0
    %65 = vmatprep.subr.mxu0 0.0
    %66 = vmatpush1.xpose.msra.mxu0 0.0
    %67 = vmatprep.subr.mxu0 0.0
    %68 = vmatpush1.xpose.msra.mxu0 0.0
    %69 = vmatprep.subr.mxu0 0.0
    %70 = vmatpush1.xpose.msra.mxu0 0.0
    %71 = vmatprep.subr.mxu0 0.0
    %72 = vmatpush1.xpose.msra.mxu0 0.0
    %73 = vmatprep.subr.mxu0 0.0
    %74 = vmatpush1.xpose.msra.mxu0 0.0
    %75 = vmatprep.subr.mxu0 0.0
    %76 = vmatpush1.xpose.msra.mxu0 0.0
    %77 = vmatprep.subr.mxu0 0.0
    %78 = vmatpush1.xpose.msra.mxu0 0.0
    %79 = vmatprep.subr.mxu0 0.0
    %80 = vmatpush1.xpose.msra.mxu0 0.0
    %81 = vmatprep.subr.mxu0 0.0
    %82 = vmatpush1.xpose.msra.mxu0 0.0
    %83 = vmatprep.subr.mxu0 0.0
    %84 = vmatpush1.xpose.msra.mxu0 0.0
    %85 = vmatprep.subr.mxu0 0.0
    %86 = vmatpush1.xpose.msra.mxu0 0.0
    %87 = vmatprep.subr.mxu0 0.0
    %88 = vmatpush1.xpose.msra.mxu0 0.0
    %89 = vmatprep.subr.mxu0 0.0
    %90 = vmatpush1.xpose.msra.mxu0 0.0
    %91 = vmatprep.mubr.f32.mxu0 0.0
    %92 = vmatmul.mubr.f32.gmra.mrb[0].mxu0 %v22
    %v93 = vpop.f32.mrb[0].mxu0
    %v94 = vadd.f32 %v19, %v93
    %v95 = vpop.f32.mrb[0].mxu0
    %96 = vdwg.mxu0
    %v97 = vmul.f32 %v94, 1.442695
    %v98 = vpow.pop %v97
    %vm99 = vcmask 57344
    %100 = vst.msk [vmem:[#allocation3] sm:$0x1] %vm99, %v98
    // Predicated region
    $region14: #{tpu_custom_call.1} parent=1 // pred_check
      _
    $region15: #{tpu_custom_call.1} parent=1 // pred_check_branch
      %102 = sbr.rel (0) target = $region17
    $region16: #{tpu_custom_call.1} parent=1 // pred_region
      %s104 = ssub.s32 16, 16
      %105 = vsyncadd [#allocation4], %s104
      %s107 = sshll.u32 [#allocation3], 4
      %s108 = int_to_ptr.vmem [resolvable:$true] %s107
      %110 = dma.vmem_to_hbm [thread:$0]  %s108, 16, %s3, [#allocation4]
    $region17: #{tpu_custom_call.1} parent=1 // pred_fallthru
      _
    // Predicated region
    $region18: #{tpu_custom_call.1} parent=1 // pred_check
      _
    $region19: #{tpu_custom_call.1} parent=1 // pred_check_branch
      %112 = sbr.rel (0) target = $region21
    $region20: #{tpu_custom_call.1} parent=1 // pred_region
      %113 = dma.done [#allocation4], 16
    $region21: #{tpu_custom_call.1} parent=1 // pred_fallthru
      _
    %114 = vsyncpa [#allocation4], 1

</llo_original>
